<compile_context>
chip_gen: v7x
topology: tpu7x:2x2x1
jax: 0.10.0
libtpu: 0.0.40
codegen_flags: <defaults>
</compile_context>

<pallas_src>
import math
import functools

import jax
import jax.numpy as jnp
from jax.experimental import pallas as pl
from jax.experimental.pallas import tpu as pltpu

_LANE = 128      # TPU lane width (fast axis)
_SUBLANE = 8     # TPU sublane width (slow axis)


def _round_up(x, m):
    return (x + m - 1) // m * m


def _round_down(x, m):
    return (x // m) * m


# --------------------------------------------------------------------------
# Fused kernel: whole MLP stack for one [Cin, TN] column block.
# --------------------------------------------------------------------------
def _mlp_stack_kernel(n_layers, *refs):
    """refs = (x_ref, w0_ref, s0_ref, w1_ref, s1_ref, ..., o_ref).

    x_ref : [Cin, TN]          f32   (batch dim squeezed by the BlockSpec)
    w_l   : [C_{l+1}p, C_lp]   bf16  (folded conv+BN weight, laid out for W @ h)
    s_l   : [C_{l+1}p, 1]      f32   (folded conv bias + BN shift)
    o_ref : [Cout, TN]
    """
    x_ref = refs[0]
    o_ref = refs[-1]
    h = x_ref[...]                                        # [Cin, TN] f32
    for l in range(n_layers):
        w = refs[1 + 2 * l][...]                          # [Co_p, Ci_p] bf16
        s = refs[2 + 2 * l][...]                          # [Co_p, 1]   f32
        # bf16 MXU matmul with f32 accumulation; bias-add + ReLU stay in f32.
        h = jnp.dot(w, h.astype(jnp.bfloat16),
                    preferred_element_type=jnp.float32)   # [Co_p, TN] f32
        h = jnp.maximum(h + s, 0.0)
    o_ref[...] = h.astype(o_ref.dtype)


def fused_mlp_stack(x_ncw, layer_params, *, tn):
    """x_ncw: [B, Cin, N] f32.  layer_params: list of
    (W [Co_p, Ci_p] bf16, shift [Co_p, 1] f32).  Returns [B, Cout, N] f32
    (the last layer's Cout is unpadded, so no post-kernel slicing is needed)."""
    B, cin, N = x_ncw.shape
    n_layers = len(layer_params)
    cout = layer_params[-1][0].shape[0]
    grid = (B, pl.cdiv(N, tn))

    # Activations: one batch element x full Cin x TN spatial columns per step.
    # (Last block may be partial: OOB reads are padding, OOB writes are masked;
    #  every output column depends only on its own input column, so this is safe.)
    in_specs = [pl.BlockSpec((None, cin, tn), lambda b, j: (b, 0, j))]
    flat_args = [x_ncw]
    for (w, s) in layer_params:
        # Whole-array blocks with a constant index -> fetched once, resident in
        # VMEM for the entire grid.  They are tiny, so double-buffering them is
        # harmless (pl.Buffered(1) could shave it further if widths ever grow).
        in_specs.append(pl.BlockSpec(w.shape, lambda b, j: (0, 0)))
        in_specs.append(pl.BlockSpec(s.shape, lambda b, j: (0, 0)))
        flat_args += [w, s]

    out_spec = pl.BlockSpec((None, cout, tn), lambda b, j: (b, 0, j))

    return pl.pallas_call(
        functools.partial(_mlp_stack_kernel, n_layers),
        out_shape=jax.ShapeDtypeStruct((B, cout, N), jnp.float32),
        grid=grid,
        in_specs=in_specs,
        out_specs=out_spec,
        compiler_params=pltpu.CompilerParams(
            # Batch and spatial tiles are fully independent -> megacore / v7x's
            # two TensorCores can split either axis.
            dimension_semantics=("parallel", "parallel"),
        ),
    )(*flat_args)


# --------------------------------------------------------------------------
# Parameter init (mirrors the PyTorch module) + bias/BN folding + layout.
# --------------------------------------------------------------------------
def init_params(key, nch_input, nch_layers, *, eps=1e-5):
    """Conv1d(last, outp, 1) with xavier_normal weight + default-uniform bias,
    BatchNorm1d(outp) with default (identity) running stats, evaluated in
    inference mode and folded into one [Cout_p, Cin_p] bf16 weight and one
    [Cout_p, 1] f32 shift per layer, laid out for the NCW-native
    relu(W @ h + shift) kernel.

    Intermediate layer widths are zero-padded to a multiple of 8 (sublane);
    padded channels stay exactly 0 through the stack (zero weights/shift,
    relu(0)=0).  The LAST layer is left unpadded so the kernel writes the
    final [B, Cout, N] directly with no post-slice."""
    params = []
    last = nch_input          # true input width of this layer
    last_p = nch_input        # padded input width (== previous layer's padded output)
    n = len(nch_layers)
    for i, outp in enumerate(nch_layers):
        key, kw, kb = jax.random.split(key, 3)
        # xavier_normal_(gain=1) for a 1x1 Conv1d: std = sqrt(2 / (fan_in + fan_out))
        std = math.sqrt(2.0 / (last + outp))
        w = std * jax.random.normal(kw, (outp, last), dtype=jnp.float32)   # [Cout, Cin]
        # PyTorch Conv1d default bias init: U(-1/sqrt(fan_in), 1/sqrt(fan_in))
        bound = 1.0 / math.sqrt(last)
        b = jax.random.uniform(kb, (outp,), minval=-bound, maxval=bound,
                               dtype=jnp.float32)
        gamma = jnp.ones((outp,), jnp.float32)
        beta = jnp.zeros((outp,), jnp.float32)
        running_mean = jnp.zeros((outp,), jnp.float32)
        running_var = jnp.ones((outp,), jnp.float32)

        # Fold eval-mode BN + conv bias:  y = ((W@x + b) - mean)*scale + beta
        scale = gamma / jnp.sqrt(running_var + eps)
        w_folded = w * scale[:, None]                       # [Cout, Cin]
        shift = (b - running_mean) * scale + beta           # [Cout]

        cout_p = outp if i == n - 1 else _round_up(outp, _SUBLANE)
        w_pad = jnp.zeros((cout_p, last_p), jnp.float32).at[:outp, :last].set(w_folded)
        s_pad = jnp.zeros((cout_p, 1), jnp.float32).at[:outp, 0].set(shift)
        params.append((w_pad.astype(jnp.bfloat16), s_pad))
        last, last_p = outp, cout_p
    return params


# --------------------------------------------------------------------------
# Forward wrapper: [B, Cin, N] -> [B, Cout, N]   (no HBM-side reshapes/pads)
# --------------------------------------------------------------------------
@functools.partial(jax.jit, static_argnames=("tn_target",))
def mlpnet_relu_forward(x_ncw, params, tn_target=8192):
    B, cin, N = x_ncw.shape
    assert cin == params[0][0].shape[1], "input channels do not match params"

    # ---- spatial tile size --------------------------------------------------
    # Cap TN so (double-buffered in/out blocks + f32/bf16 intermediates) stay
    # well under v5e's 16 MiB default scoped VMEM and inside v7x's 64 MiB
    # physical VMEM -> no vmem_limit_bytes override needed on any generation.
    max_ch = max(cin, max(int(w.shape[0]) for (w, _) in params))
    vmem_budget = 12 * 1024 * 1024
    tn_cap = max(_LANE, _round_down(vmem_budget // (6 * max_ch * 4), _LANE))
    tgt = min(int(tn_target), tn_cap)
    if N <= tgt:
        tn = N                                    # one block == full spatial dim (always legal)
    else:
        tn = max(_LANE, _round_down(tgt, _LANE))  # lane-aligned tile; last block may be partial
    # v7x: its two TensorCores split a "parallel" grid -> ensure >= 2 grid steps.
    if B * pl.cdiv(N, tn) < 2 and N >= 2 * _LANE:
        tn = _round_up(pl.cdiv(N, 2), _LANE)

    return fused_mlp_stack(x_ncw.astype(jnp.float32), params, tn=tn)


# --------------------------------------------------------------------------
# Demo / self-check
# --------------------------------------------------------------------------
if __name__ == "__main__":
    key = jax.random.PRNGKey(0)
    key, kx = jax.random.split(key)

    # Small shapes consistent with the module's [B, Cin, N] contract.
    B, Cin, N = 2, 4, 128
    nch_layers = (32, 64)

    x = jax.random.normal(kx, (B, Cin, N), dtype=jnp.float32)
    params = init_params(key, Cin, nch_layers)

    out = mlpnet_relu_forward(x, params)
    out = jax.block_until_ready(out)

    # Pure-JAX reference with identical numerics (same folded bf16 weights,
    # bf16 activations into the matmul, f32 accumulation + bias-add + ReLU).
    h = x
    for (w, s) in params:
        y = jnp.einsum("oc,bcn->bon", w, h.astype(jnp.bfloat16),
                       preferred_element_type=jnp.float32)
        h = jnp.maximum(y + s[None, :, :], 0.0)
    ref = h

    assert out.shape == (B, nch_layers[-1], N), out.shape
    assert out.dtype == jnp.float32
    assert bool(jnp.all(out >= 0.0))                       # ReLU output is non-negative
    assert bool(jnp.allclose(out, ref, atol=1e-3, rtol=1e-3)), \
        float(jnp.max(jnp.abs(out - ref)))
    print("KERNEL_OK")
</pallas_src>

<mosaic_0001>
module attributes {stable_mosaic.version = 11 : i64} {
  func.func @_mlp_stack_kernel(%arg0: i32, %arg1: i32, %arg2: memref<1x4x128xf32, #tpu.memory_space<vmem>>, %arg3: memref<32x4xbf16, #tpu.memory_space<vmem>>, %arg4: memref<32x1xf32, #tpu.memory_space<vmem>>, %arg5: memref<64x32xbf16, #tpu.memory_space<vmem>>, %arg6: memref<64x1xf32, #tpu.memory_space<vmem>>, %arg7: memref<1x64x128xf32, #tpu.memory_space<vmem>>) attributes {dimension_semantics = [#tpu.dimension_semantics<parallel>, #tpu.dimension_semantics<parallel>], iteration_bounds = array<i64: 2, 1>, scalar_prefetch = 0 : i64, scratch_operands = 0 : i64, tpu.core_type = #tpu.core_type<tc>, window_params = [{transform_indices = @transform_0, window_bounds = array<i64: 1, 4, 128>}, {pipeline_mode = #tpu.pipeline_mode<synchronous>, transform_indices = @transform_1, window_bounds = array<i64: 32, 4>}, {pipeline_mode = #tpu.pipeline_mode<synchronous>, transform_indices = @transform_2, window_bounds = array<i64: 32, 1>}, {pipeline_mode = #tpu.pipeline_mode<synchronous>, transform_indices = @transform_3, window_bounds = array<i64: 64, 32>}, {pipeline_mode = #tpu.pipeline_mode<synchronous>, transform_indices = @transform_4, window_bounds = array<i64: 64, 1>}, {transform_indices = @transform_5, window_bounds = array<i64: 1, 64, 128>}]} {
    %c0 = arith.constant 0 : index
    %c0_0 = arith.constant 0 : index
    %c0_1 = arith.constant 0 : index
    %0 = vector.load %arg2[%c0, %c0_0, %c0_1] : memref<1x4x128xf32, #tpu.memory_space<vmem>>, vector<1x4x128xf32>
    %1 = vector.shape_cast %0 : vector<1x4x128xf32> to vector<4x128xf32>
    %c0_2 = arith.constant 0 : index
    %c0_3 = arith.constant 0 : index
    %2 = vector.load %arg3[%c0_2, %c0_3] : memref<32x4xbf16, #tpu.memory_space<vmem>>, vector<32x4xbf16>
    %c0_4 = arith.constant 0 : index
    %c0_5 = arith.constant 0 : index
    %3 = vector.load %arg4[%c0_4, %c0_5] : memref<32x1xf32, #tpu.memory_space<vmem>>, vector<32x1xf32>
    %4 = arith.truncf %1 : vector<4x128xf32> to vector<4x128xbf16>
    %cst = arith.constant dense<0.000000e+00> : vector<32x128xf32>
    %5 = tpu.matmul %2, %4, %cst {dimension_numbers = #tpu.dot_dimension_numbers<[1], [0], [0], [1], [0, 0, 1, 1], [], []>} : vector<32x4xbf16>, vector<4x128xbf16>, vector<32x128xf32> -> vector<32x128xf32>
    %6 = vector.broadcast %3 : vector<32x1xf32> to vector<32x128xf32>
    %7 = arith.addf %5, %6 : vector<32x128xf32>
    %cst_6 = arith.constant 0.000000e+00 : f32
    %8 = vector.broadcast %cst_6 : f32 to vector<32x128xf32>
    %9 = arith.maximumf %7, %8 : vector<32x128xf32>
    %c0_7 = arith.constant 0 : index
    %c0_8 = arith.constant 0 : index
    %10 = vector.load %arg5[%c0_7, %c0_8] : memref<64x32xbf16, #tpu.memory_space<vmem>>, vector<64x32xbf16>
    %c0_9 = arith.constant 0 : index
    %c0_10 = arith.constant 0 : index
    %11 = vector.load %arg6[%c0_9, %c0_10] : memref<64x1xf32, #tpu.memory_space<vmem>>, vector<64x1xf32>
    %12 = arith.truncf %9 : vector<32x128xf32> to vector<32x128xbf16>
    %cst_11 = arith.constant dense<0.000000e+00> : vector<64x128xf32>
    %13 = tpu.matmul %10, %12, %cst_11 {dimension_numbers = #tpu.dot_dimension_numbers<[1], [0], [0], [1], [0, 0, 1, 1], [], []>} : vector<64x32xbf16>, vector<32x128xbf16>, vector<64x128xf32> -> vector<64x128xf32>
    %14 = vector.broadcast %11 : vector<64x1xf32> to vector<64x128xf32>
    %15 = arith.addf %13, %14 : vector<64x128xf32>
    %cst_12 = arith.constant 0.000000e+00 : f32
    %16 = vector.broadcast %cst_12 : f32 to vector<64x128xf32>
    %17 = arith.maximumf %15, %16 : vector<64x128xf32>
    %c0_13 = arith.constant 0 : index
    %c0_14 = arith.constant 0 : index
    %c0_15 = arith.constant 0 : index
    %18 = vector.load %arg7[%c0_13, %c0_14, %c0_15] : memref<1x64x128xf32, #tpu.memory_space<vmem>>, vector<1x64x128xf32>
    %19 = vector.shape_cast %18 : vector<1x64x128xf32> to vector<64x128xf32>
    %20 = vector.shape_cast %17 : vector<64x128xf32> to vector<1x64x128xf32>
    tpu.vector_store %arg7[%c0_13, %c0_14, %c0_15], %20 {strides = array<i32>} : memref<1x64x128xf32, #tpu.memory_space<vmem>>, vector<1x64x128xf32>,
    return
  }
  func.func @transform_0(%arg0: i32, %arg1: i32) -> (i32, i32, i32) {
    %c0_i32 = arith.constant 0 : i32
    %c0_i32_0 = arith.constant 0 : i32
    return %arg0, %c0_i32, %arg1 : i32, i32, i32
  }
  func.func @transform_1(%arg0: i32, %arg1: i32) -> (i32, i32) {
    %c0_i32 = arith.constant 0 : i32
    %c0_i32_0 = arith.constant 0 : i32
    %c0_i32_1 = arith.constant 0 : i32
    return %c0_i32, %c0_i32_0 : i32, i32
  }
  func.func @transform_2(%arg0: i32, %arg1: i32) -> (i32, i32) {
    %c0_i32 = arith.constant 0 : i32
    %c0_i32_0 = arith.constant 0 : i32
    %c0_i32_1 = arith.constant 0 : i32
    return %c0_i32, %c0_i32_0 : i32, i32
  }
  func.func @transform_3(%arg0: i32, %arg1: i32) -> (i32, i32) {
    %c0_i32 = arith.constant 0 : i32
    %c0_i32_0 = arith.constant 0 : i32
    %c0_i32_1 = arith.constant 0 : i32
    return %c0_i32, %c0_i32_0 : i32, i32
  }
  func.func @transform_4(%arg0: i32, %arg1: i32) -> (i32, i32) {
    %c0_i32 = arith.constant 0 : i32
    %c0_i32_0 = arith.constant 0 : i32
    %c0_i32_1 = arith.constant 0 : i32
    return %c0_i32, %c0_i32_0 : i32, i32
  }
  func.func @transform_5(%arg0: i32, %arg1: i32) -> (i32, i32, i32) {
    %c0_i32 = arith.constant 0 : i32
    %c0_i32_0 = arith.constant 0 : i32
    return %arg0, %c0_i32, %arg1 : i32, i32, i32
  }
}

</mosaic_0001>

<llo_original>
// kernel: mlpnet_relu_forward.1
$region0: #{mlpnet_relu_forward.1}
  #allocation0 [shape = 'u32[]', space=smem, size = 0x4, offset = 0x4, fixed_abs, tag = 'smem constant byte address 0x4 - core index']
  #allocation1 [shape = 'u32[144,128]{1,0:T(1,128)}', space=vmem, size = 0x12000, scoped, tag = 'internal scratch']
  %s0 = inlined_call_operand.vmem [shape: f32[2,4,128], index: 0, kind: input, shape index: {}]
  %s1 = inlined_call_operand.vmem [shape: bf16[32,4], index: 1, kind: input, shape index: {}]
  %s2 = inlined_call_operand.vmem [shape: f32[32,1], index: 2, kind: input, shape index: {}]
  %s3 = inlined_call_operand.vmem [shape: bf16[64,32], index: 3, kind: input, shape index: {}]
  %s4 = inlined_call_operand.vmem [shape: f32[64,1], index: 4, kind: input, shape index: {}]
  %s5 = inlined_call_operand.hbm [shape: f32[2,64,128], index: 5, kind: output, shape index: {}]
  %s6 = sld [smem:[#allocation0]]
  $region53: #{mlpnet_relu_forward.1} parent=0
    _
  %s8 = ssub.s32 1, %s6
  %s9 = scalar_select 0, %s8, %s6
  $region1: #{mlpnet_relu_forward.1} parent=0
    #allocation2 [shape = 'u8[65536]{0}', space=vmem, size = 0x10000, scoped, tag = 'output window, operand 0']
    #allocation3 [shape = 's32[2]{0}', space=sflag, size = 0x8, scoped, tag = 'scoped memory for mlpnet_relu_forward.1']
    %10 = vsyncpa [#allocation3], 0
    %s11 = scalar_lea.sflag [#allocation3], 1
    %12 = vsyncpa %s11, 0
    loop: start=0, step=1, limit=4
    $region2: #{mlpnet_relu_forward.1} parent=1 // loop_pre_header
      _
    $region3: #{mlpnet_relu_forward.1} parent=1 // loop_header
      %s14 = sphi 0, %s18
      %p15 = scmp.ge.s32.totalorder %s14, 4
      %s21 = sphi 0, %s33
      %s22 = sphi 0, %s29
      %s23 = sphi 0, %s21
      %s24 = sphi 0, %s22
      %s25 = sphi 0, %s23
      %s26 = sphi 0, %s24
      %s38 = sphi 0, %s40
      %s41 = sphi 0, %s38
      %s42 = sphi 0, %s41
      %s58 = sphi 0, %s42
      %s62 = sphi 0, %s62
      %s64 = sphi 0, %s62
      %s65 = sphi 0, %s64
      %s79 = sphi 0, %s65
      %s83 = sphi 0, %s83
      %s85 = sphi 0, %s83
      %s86 = sphi 0, %s85
      %s100 = sphi 0, %s86
      %s104 = sphi 0, %s104
      %s106 = sphi 0, %s104
      %s107 = sphi 0, %s106
      %s121 = sphi 0, %s107
      %s125 = sphi 0, %s125
      %s127 = sphi 0, %s125
      %s128 = sphi 0, %s127
      %s142 = sphi 0, %s128
      %s150 = sphi 0, %s152
      %s153 = sphi 0, %s150
      %s154 = sphi 0, %s153
      %s170 = sphi 0, %s154
    $region4: #{mlpnet_relu_forward.1} parent=1 // loop_header_branch
      %17 = sbr.rel (%p15) target = $region8
    $region5: #{mlpnet_relu_forward.1} parent=1 // loop_body
      %s19 = ssub.s32 %s14, 1
      %s20 = ssub.s32 %s14, 2
      %s27 = sadd.s32 1, %s22
      %p28 = scmp.ge.s32.totalorder %s27, 1
      %s29 = scalar_select %p28, 0, %s27
      %s30 = sadd.s32 1, %s21
      %s31 = scalar_select %p28, %s30, %s21
      %p32 = scmp.ge.s32.totalorder %s31, 2
      %s33 = scalar_select %p32, 0, %s31
      %s34 = ssub.s32 %s21, %s33
      %s35 = ssub.s32 %s22, %s29
      %s36 = sor.u32 %s34, %s35
      %p37 = scmp.eq.s32.totalorder %s36, 0
      %s39 = sadd.s32 %s38, 1
      %s40 = scalar_select %p37, %s38, %s39
      %p43 = pneg %p37
      %p44 = scmp.eq.s32.totalorder %s14, 1
      %p45 = por %p43, %p44
      %p46 = scmp.ne.s32.totalorder %s38, %s41
      %p47 = scmp.eq.s32.totalorder %s14, 0
      %p48 = por %p46, %p47
      %p49 = scmp.ne.s32.totalorder %s38, %s41
      %p50 = scmp.eq.s32.totalorder %s19, 1
      %p51 = por %p49, %p50
      %p52 = scmp.ne.s32.totalorder %s41, %s42
      %p53 = scmp.eq.s32.totalorder %s19, 0
      %p54 = por %p52, %p53
      %p55 = scmp.ne.s32.totalorder %s41, %s42
      %p56 = scmp.eq.s32.totalorder %s20, 1
      %p57 = por %p55, %p56
      %p59 = scmp.ne.s32.totalorder %s42, %s58
      %p60 = scmp.eq.s32.totalorder %s20, 0
      %p61 = por %p59, %p60
      %s63 = sadd.s32 %s62, 1
      %p66 = scmp.eq.s32.totalorder %s14, 1
      %p67 = scmp.ne.s32.totalorder %s62, %s64
      %p68 = scmp.eq.s32.totalorder %s14, 0
      %p69 = por %p67, %p68
      %p70 = scmp.ne.s32.totalorder %s62, %s64
      %p71 = scmp.eq.s32.totalorder %s19, 1
      %p72 = por %p70, %p71
      %p73 = scmp.ne.s32.totalorder %s64, %s65
      %p74 = scmp.eq.s32.totalorder %s19, 0
      %p75 = por %p73, %p74
      %p76 = scmp.ne.s32.totalorder %s64, %s65
      %p77 = scmp.eq.s32.totalorder %s20, 1
      %p78 = por %p76, %p77
      %p80 = scmp.ne.s32.totalorder %s65, %s79
      %p81 = scmp.eq.s32.totalorder %s20, 0
      %p82 = por %p80, %p81
      %s84 = sadd.s32 %s83, 1
      %p87 = scmp.eq.s32.totalorder %s14, 1
      %p88 = scmp.ne.s32.totalorder %s83, %s85
      %p89 = scmp.eq.s32.totalorder %s14, 0
      %p90 = por %p88, %p89
      %p91 = scmp.ne.s32.totalorder %s83, %s85
      %p92 = scmp.eq.s32.totalorder %s19, 1
      %p93 = por %p91, %p92
      %p94 = scmp.ne.s32.totalorder %s85, %s86
      %p95 = scmp.eq.s32.totalorder %s19, 0
      %p96 = por %p94, %p95
      %p97 = scmp.ne.s32.totalorder %s85, %s86
      %p98 = scmp.eq.s32.totalorder %s20, 1
      %p99 = por %p97, %p98
      %p101 = scmp.ne.s32.totalorder %s86, %s100
      %p102 = scmp.eq.s32.totalorder %s20, 0
      %p103 = por %p101, %p102
      %s105 = sadd.s32 %s104, 1
      %p108 = scmp.eq.s32.totalorder %s14, 1
      %p109 = scmp.ne.s32.totalorder %s104, %s106
      %p110 = scmp.eq.s32.totalorder %s14, 0
      %p111 = por %p109, %p110
      %p112 = scmp.ne.s32.totalorder %s104, %s106
      %p113 = scmp.eq.s32.totalorder %s19, 1
      %p114 = por %p112, %p113
      %p115 = scmp.ne.s32.totalorder %s106, %s107
      %p116 = scmp.eq.s32.totalorder %s19, 0
      %p117 = por %p115, %p116
      %p118 = scmp.ne.s32.totalorder %s106, %s107
      %p119 = scmp.eq.s32.totalorder %s20, 1
      %p120 = por %p118, %p119
      %p122 = scmp.ne.s32.totalorder %s107, %s121
      %p123 = scmp.eq.s32.totalorder %s20, 0
      %p124 = por %p122, %p123
      %s126 = sadd.s32 %s125, 1
      %p129 = scmp.eq.s32.totalorder %s14, 1
      %p130 = scmp.ne.s32.totalorder %s125, %s127
      %p131 = scmp.eq.s32.totalorder %s14, 0
      %p132 = por %p130, %p131
      %p133 = scmp.ne.s32.totalorder %s125, %s127
      %p134 = scmp.eq.s32.totalorder %s19, 1
      %p135 = por %p133, %p134
      %p136 = scmp.ne.s32.totalorder %s127, %s128
      %p137 = scmp.eq.s32.totalorder %s19, 0
      %p138 = por %p136, %p137
      %p139 = scmp.ne.s32.totalorder %s127, %s128
      %p140 = scmp.eq.s32.totalorder %s20, 1
      %p141 = por %p139, %p140
      %p143 = scmp.ne.s32.totalorder %s128, %s142
      %p144 = scmp.eq.s32.totalorder %s20, 0
      %p145 = por %p143, %p144
      %s146 = ssub.s32 %s21, %s33
      %s147 = ssub.s32 %s22, %s29
      %s148 = sor.u32 %s146, %s147
      %p149 = scmp.eq.s32.totalorder %s148, 0
      %s151 = sadd.s32 %s150, 1
      %s152 = scalar_select %p149, %s150, %s151
      %p155 = pneg %p149
      %p156 = scmp.eq.s32.totalorder %s14, 1
      %p157 = por %p155, %p156
      %p158 = scmp.ne.s32.totalorder %s150, %s153
      %p159 = scmp.eq.s32.totalorder %s14, 0
      %p160 = por %p158, %p159
      %p161 = scmp.ne.s32.totalorder %s150, %s153
      %p162 = scmp.eq.s32.totalorder %s19, 1
      %p163 = por %p161, %p162
      %p164 = scmp.ne.s32.totalorder %s153, %s154
      %p165 = scmp.eq.s32.totalorder %s19, 0
      %p166 = por %p164, %p165
      %p167 = scmp.ne.s32.totalorder %s153, %s154
      %p168 = scmp.eq.s32.totalorder %s20, 1
      %p169 = por %p167, %p168
      %p171 = scmp.ne.s32.totalorder %s154, %s170
      %p172 = scmp.eq.s32.totalorder %s20, 0
      %p173 = por %p171, %p172
      %p174 = scmp.le.s32.totalorder 1, %s14
      %p175 = scmp.lt.s32.totalorder %s14, 3
      %p176 = pnand %p174, %p175
      %p177 = pneg %p176
      // Predicated region
      $region9: #{mlpnet_relu_forward.1} parent=5 // pred_check
        _
      $region10: #{mlpnet_relu_forward.1} parent=5 // pred_check_branch
        %179 = sbr.rel (%p176) target = $region12
      $region11: #{mlpnet_relu_forward.1} parent=5 // pred_region
        %s180 = ssub.s32 %s14, 1
        // Predicated region
        $region13: #{mlpnet_relu_forward.1} parent=11 // pred_check
          %p181 = pneg %p75
        $region14: #{mlpnet_relu_forward.1} parent=11 // pred_check_branch
          %183 = sbr.rel (%p181) target = $region16
        $region15: #{mlpnet_relu_forward.1} parent=11 // pred_region
          _
        $region16: #{mlpnet_relu_forward.1} parent=11 // pred_fallthru
          _
        // Predicated region
        $region17: #{mlpnet_relu_forward.1} parent=11 // pred_check
          %p184 = pneg %p96
        $region18: #{mlpnet_relu_forward.1} parent=11 // pred_check_branch
          %186 = sbr.rel (%p184) target = $region20
        $region19: #{mlpnet_relu_forward.1} parent=11 // pred_region
          _
        $region20: #{mlpnet_relu_forward.1} parent=11 // pred_fallthru
          _
        // Predicated region
        $region21: #{mlpnet_relu_forward.1} parent=11 // pred_check
          %p187 = pneg %p117
        $region22: #{mlpnet_relu_forward.1} parent=11 // pred_check_branch
          %189 = sbr.rel (%p187) target = $region24
        $region23: #{mlpnet_relu_forward.1} parent=11 // pred_region
          _
        $region24: #{mlpnet_relu_forward.1} parent=11 // pred_fallthru
          _
        // Predicated region
        $region25: #{mlpnet_relu_forward.1} parent=11 // pred_check
          %p190 = pneg %p138
        $region26: #{mlpnet_relu_forward.1} parent=11 // pred_check_branch
          %192 = sbr.rel (%p190) target = $region28
        $region27: #{mlpnet_relu_forward.1} parent=11 // pred_region
          _
        $region28: #{mlpnet_relu_forward.1} parent=11 // pred_fallthru
          _
      $region12: #{mlpnet_relu_forward.1} parent=5 // pred_fallthru
        _
      %p193 = scmp.lt.s32.totalorder %s14, 2
      // Predicated region
      $region29: #{mlpnet_relu_forward.1} parent=5 // pred_check
        %p194 = pneg %p193
      $region30: #{mlpnet_relu_forward.1} parent=5 // pred_check_branch
        %196 = sbr.rel (%p194) target = $region32
      $region31: #{mlpnet_relu_forward.1} parent=5 // pred_region
        // Predicated region
        $region33: #{mlpnet_relu_forward.1} parent=31 // pred_check
          %p197 = pneg %p48
        $region34: #{mlpnet_relu_forward.1} parent=31 // pred_check_branch
          %199 = sbr.rel (%p197) target = $region36
        $region35: #{mlpnet_relu_forward.1} parent=31 // pred_region
          %p200 = scmp.lt.s32.totalorder %s21, 1
          %s201 = scalar_select %p200, %s21, 1
          %p202 = scmp.lt.s32.totalorder %s22, 0
          %s203 = scalar_select %p202, %s22, 0
          %s204 = sadd.s32 %s203, %s201
          %s205 = smul.addr %s204, 4
          %s206 = scalar_lea.vmem %s0, %s205
        $region36: #{mlpnet_relu_forward.1} parent=31 // pred_fallthru
          _
      $region32: #{mlpnet_relu_forward.1} parent=5 // pred_fallthru
        _
      %p207 = scmp.le.s32.totalorder 1, %s14
      %p208 = scmp.lt.s32.totalorder %s14, 3
      %p209 = pnand %p207, %p208
      %p210 = pneg %p209
      // Predicated region
      $region37: #{mlpnet_relu_forward.1} parent=5 // pred_check
        _
      $region38: #{mlpnet_relu_forward.1} parent=5 // pred_check_branch
        %212 = sbr.rel (%p209) target = $region40
      $region39: #{mlpnet_relu_forward.1} parent=5 // pred_region
        %s213 = ssub.s32 %s14, 1
        %p214 = scmp.lt.s32.totalorder %s23, 1
        %s215 = scalar_select %p214, %s23, 1
        %p216 = scmp.lt.s32.totalorder %s24, 0
        %s217 = scalar_select %p216, %s24, 0
        %s218 = sadd.s32 %s217, %s215
        %s219 = smul.addr %s218, 4
        %s220 = scalar_lea.vmem %s0, %s219
        %p221 = pneg %p54
        %p222 = pneg %p51
        %p223 = pneg %p75
        %p224 = pneg %p72
        %p225 = pneg %p96
        %p226 = pneg %p93
        %p227 = pneg %p117
        %p228 = pneg %p114
        %p229 = pneg %p138
        %p230 = pneg %p135
        %p231 = pneg %p166
        %p232 = pneg %p163
        %s233 = sand.u32 %s153, 1
        %s234 = scalar_lea.sflag [#allocation3], %s233
        %s235 = sand.u32 %s153, 1
        %s236 = smul.addr %s235, 64
        %s237 = scalar_lea.vmem [#allocation2], %s236
        %p238 = scmp.lt.s32.totalorder %s23, 1
        %s239 = scalar_select %p238, %s23, 1
        %p240 = scmp.lt.s32.totalorder %s24, 0
        %s241 = scalar_select %p240, %s24, 0
        %s242 = sadd.s32 %s241, %s239
        %s243 = smul.addr %s242, 4
        %s244 = scalar_lea.vmem %s0, %s243
        %v246 = vld [vmem:[%s244] sm:$0xf]
        %v247 = vld [vmem:[%s1] sm:$0xf]
        %v248 = vld [vmem:[%s1 + $0x4] sm:$0xf]
        %v249 = vld [vmem:[%s1 + $0x8] sm:$0xf]
        %v250 = vld [vmem:[%s1 + $0xc] sm:$0xf]
        %v251 = vld [vmem:[%s2] sm:$0xff]
        %v252 = vld [vmem:[%s2 + $0x8] sm:$0xff]
        %v253 = vld [vmem:[%s2 + $0x10] sm:$0xff]
        %v254 = vld [vmem:[%s2 + $0x18] sm:$0xff]
        %v255 = vpack.c.bf16 %v246, %v246
        %257 = vset.pattern.permute.xlu0 0
        %258 = vperm.xlu0 %257, %v251
        %v259 = vpop.permute.xlu0 %258
        %262 = vset.pattern.permute.xlu0 0
        %263 = vperm.xlu0 %262, %v252
        %v264 = vpop.permute.xlu0 %263
        %267 = vset.pattern.permute.xlu0 0
        %268 = vperm.xlu0 %267, %v253
        %v269 = vpop.permute.xlu0 %268
        %272 = vset.pattern.permute.xlu0 0
        %273 = vperm.xlu0 %272, %v254
        %v274 = vpop.permute.xlu0 %273
        %v280 = vunpack.c.l.b16 %v247
        %v281 = vunpack.c.l.b16 %v248
        %v282 = vunpack.c.l.b16 %v249
        %v283 = vunpack.c.l.b16 %v250
        %v284 = vpack.c.b16 %v281, %v280
        %v285 = vpack.c.b16 %v283, %v282
        %vm286 = vcmask 31744
        %v288 = vsel %vm286, %v284, 0
        %v291 = vsel %vm286, %v285, 0
        %vm293 = vcmask 1041408
        %v295 = vsel %vm293, %v255, 0
        %297 = vmatprep.subr.bf16.mxu0 0
        %298 = vmatpush1.bf16.msra.mxu0 %v295
        %299 = vmatprep.subr.bf16.mxu0 0
        %300 = vmatpush1.bf16.msra.mxu0 0
        %301 = vmatprep.subr.bf16.mxu0 0
        %302 = vmatpush1.bf16.msra.mxu0 0
        %303 = vmatprep.subr.bf16.mxu0 0
        %304 = vmatpush1.bf16.msra.mxu0 0
        %305 = vmatprep.subr.bf16.mxu0 0
        %306 = vmatpush1.bf16.msra.mxu0 0
        %307 = vmatprep.subr.bf16.mxu0 0
        %308 = vmatpush1.bf16.msra.mxu0 0
        %309 = vmatprep.subr.bf16.mxu0 0
        %310 = vmatpush1.bf16.msra.mxu0 0
        %311 = vmatprep.subr.bf16.mxu0 0
        %312 = vmatpush1.bf16.msra.mxu0 0
        %313 = vmatprep.subr.bf16.mxu0 0
        %314 = vmatpush1.bf16.msra.mxu0 0
        %315 = vmatprep.subr.bf16.mxu0 0
        %316 = vmatpush1.bf16.msra.mxu0 0
        %317 = vmatprep.subr.bf16.mxu0 0
        %318 = vmatpush1.bf16.msra.mxu0 0
        %319 = vmatprep.subr.bf16.mxu0 0
        %320 = vmatpush1.bf16.msra.mxu0 0
        %321 = vmatprep.subr.bf16.mxu0 0
        %322 = vmatpush1.bf16.msra.mxu0 0
        %323 = vmatprep.subr.bf16.mxu0 0
        %324 = vmatpush1.bf16.msra.mxu0 0
        %325 = vmatprep.subr.bf16.mxu0 0
        %326 = vmatpush1.bf16.msra.mxu0 0
        %327 = vmatprep.subr.bf16.mxu0 0
        %328 = vmatpush1.bf16.msra.mxu0 0
        %329 = vmatprep.mubr.bf16.mxu0 0
        %330 = vmatmul.mubr.bf16.gmra.mrb[0].mxu0 %v288
        %v331 = vpop.f32.mrb[0].mxu0
        %v332 = vadd.f32 %v259, %v331
        %v333 = vpop.f32.mrb[0].mxu0
        %v334 = vpop.f32.mrb[0].mxu0
        %v335 = vadd.f32 %v264, %v334
        %v336 = vpop.f32.mrb[0].mxu0
        %337 = vmatprep.mubr.bf16.mxu0 0
        %338 = vmatmul.mubr.bf16.gmra.mrb[0].mxu0 %v291
        %v339 = vpop.f32.mrb[0].mxu0
        %v340 = vadd.f32 %v269, %v339
        %v341 = vpop.f32.mrb[0].mxu0
        %v342 = vpop.f32.mrb[0].mxu0
        %v343 = vadd.f32 %v274, %v342
        %v344 = vpop.f32.mrb[0].mxu0
        %345 = vdwg.mxu0
        %v346 = vmax.f32 %v332, 0.0
        %v347 = vmax.f32 %v335, 0.0
        %v348 = vmax.f32 %v340, 0.0
        %v349 = vmax.f32 %v343, 0.0
        %v350 = vld [vmem:[%s3] sm:$0xf]
        %v351 = vld [vmem:[%s3 + $0x4] sm:$0xf]
        %v352 = vld [vmem:[%s3 + $0x8] sm:$0xf]
        %v353 = vld [vmem:[%s3 + $0xc] sm:$0xf]
        %v354 = vld [vmem:[%s3 + $0x10] sm:$0xf]
        %v355 = vld [vmem:[%s3 + $0x14] sm:$0xf]
        %v356 = vld [vmem:[%s3 + $0x18] sm:$0xf]
        %v357 = vld [vmem:[%s3 + $0x1c] sm:$0xf]
        %v358 = vld [vmem:[%s4] sm:$0xff]
        %v359 = vld [vmem:[%s4 + $0x8] sm:$0xff]
        %v360 = vld [vmem:[%s4 + $0x10] sm:$0xff]
        %v361 = vld [vmem:[%s4 + $0x18] sm:$0xff]
        %v362 = vld [vmem:[%s4 + $0x20] sm:$0xff]
        %v363 = vld [vmem:[%s4 + $0x28] sm:$0xff]
        %v364 = vld [vmem:[%s4 + $0x30] sm:$0xff]
        %v365 = vld [vmem:[%s4 + $0x38] sm:$0xff]
        %v366 = vpack.c.bf16 %v347, %v346
        %v367 = vpack.c.bf16 %v349, %v348
        %369 = vset.pattern.permute.xlu0 0
        %370 = vperm.xlu0 %369, %v358
        %v371 = vpop.permute.xlu0 %370
        %374 = vset.pattern.permute.xlu0 0
        %375 = vperm.xlu0 %374, %v359
        %v376 = vpop.permute.xlu0 %375
        %379 = vset.pattern.permute.xlu0 0
        %380 = vperm.xlu0 %379, %v360
        %v381 = vpop.permute.xlu0 %380
        %384 = vset.pattern.permute.xlu0 0
        %385 = vperm.xlu0 %384, %v361
        %v386 = vpop.permute.xlu0 %385
        %389 = vset.pattern.permute.xlu0 0
        %390 = vperm.xlu0 %389, %v362
        %v391 = vpop.permute.xlu0 %390
        %394 = vset.pattern.permute.xlu0 0
        %395 = vperm.xlu0 %394, %v363
        %v396 = vpop.permute.xlu0 %395
        %399 = vset.pattern.permute.xlu0 0
        %400 = vperm.xlu0 %399, %v364
        %v401 = vpop.permute.xlu0 %400
        %404 = vset.pattern.permute.xlu0 0
        %405 = vperm.xlu0 %404, %v365
        %v406 = vpop.permute.xlu0 %405
        %v416 = vunpack.c.l.b16 %v350
        %v417 = vunpack.c.l.b16 %v351
        %v418 = vunpack.c.l.b16 %v352
        %v419 = vunpack.c.l.b16 %v353
        %v420 = vunpack.c.l.b16 %v354
        %v421 = vunpack.c.l.b16 %v355
        %v422 = vunpack.c.l.b16 %v356
        %v423 = vunpack.c.l.b16 %v357
        %v424 = vpack.c.b16 %v417, %v416
        %v425 = vpack.c.b16 %v419, %v418
        %v426 = vpack.c.b16 %v421, %v420
        %v427 = vpack.c.b16 %v423, %v422
        %vm428 = vcmask 261120
        %v430 = vsel %vm428, %v424, 0
        %v433 = vsel %vm428, %v425, 0
        %v436 = vsel %vm428, %v426, 0
        %v439 = vsel %vm428, %v427, 0
        %441 = vmatprep.subr.bf16.mxu0 0
        %442 = vmatpush1.bf16.msra.mxu0 %v366
        %443 = vmatprep.subr.bf16.mxu0 0
        %444 = vmatpush1.bf16.msra.mxu0 %v367
        %445 = vmatprep.subr.bf16.mxu0 0
        %446 = vmatpush1.bf16.msra.mxu0 0
        %447 = vmatprep.subr.bf16.mxu0 0
        %448 = vmatpush1.bf16.msra.mxu0 0
        %449 = vmatprep.subr.bf16.mxu0 0
        %450 = vmatpush1.bf16.msra.mxu0 0
        %451 = vmatprep.subr.bf16.mxu0 0
        %452 = vmatpush1.bf16.msra.mxu0 0
        %453 = vmatprep.subr.bf16.mxu0 0
        %454 = vmatpush1.bf16.msra.mxu0 0
        %455 = vmatprep.subr.bf16.mxu0 0
        %456 = vmatpush1.bf16.msra.mxu0 0
        %457 = vmatprep.subr.bf16.mxu0 0
        %458 = vmatpush1.bf16.msra.mxu0 0
        %459 = vmatprep.subr.bf16.mxu0 0
        %460 = vmatpush1.bf16.msra.mxu0 0
        %461 = vmatprep.subr.bf16.mxu0 0
        %462 = vmatpush1.bf16.msra.mxu0 0
        %463 = vmatprep.subr.bf16.mxu0 0
        %464 = vmatpush1.bf16.msra.mxu0 0
        %465 = vmatprep.subr.bf16.mxu0 0
        %466 = vmatpush1.bf16.msra.mxu0 0
        %467 = vmatprep.subr.bf16.mxu0 0
        %468 = vmatpush1.bf16.msra.mxu0 0
        %469 = vmatprep.subr.bf16.mxu0 0
        %470 = vmatpush1.bf16.msra.mxu0 0
        %471 = vmatprep.subr.bf16.mxu0 0
        %472 = vmatpush1.bf16.msra.mxu0 0
        %473 = vmatprep.mubr.bf16.mxu0 0
        %474 = vmatmul.mubr.bf16.gmra.mrb[0].mxu0 %v430
        %v475 = vpop.f32.mrb[0].mxu0
        %v476 = vadd.f32 %v371, %v475
        %v477 = vpop.f32.mrb[0].mxu0
        %v478 = vpop.f32.mrb[0].mxu0
        %v479 = vadd.f32 %v376, %v478
        %v480 = vpop.f32.mrb[0].mxu0
        %481 = vmatprep.mubr.bf16.mxu0 0
        %482 = vmatmul.mubr.bf16.gmra.mrb[0].mxu0 %v433
        %v483 = vpop.f32.mrb[0].mxu0
        %v484 = vadd.f32 %v381, %v483
        %v485 = vpop.f32.mrb[0].mxu0
        %v486 = vpop.f32.mrb[0].mxu0
        %v487 = vadd.f32 %v386, %v486
        %v488 = vpop.f32.mrb[0].mxu0
        %489 = vmatprep.mubr.bf16.mxu0 0
        %490 = vmatmul.mubr.bf16.gmra.mrb[0].mxu0 %v436
        %v491 = vpop.f32.mrb[0].mxu0
        %v492 = vadd.f32 %v391, %v491
        %v493 = vpop.f32.mrb[0].mxu0
        %v494 = vpop.f32.mrb[0].mxu0
        %v495 = vadd.f32 %v396, %v494
        %v496 = vpop.f32.mrb[0].mxu0
        %497 = vmatprep.mubr.bf16.mxu0 0
        %498 = vmatmul.mubr.bf16.gmra.mrb[0].mxu0 %v439
        %v499 = vpop.f32.mrb[0].mxu0
        %v500 = vadd.f32 %v401, %v499
        %v501 = vpop.f32.mrb[0].mxu0
        %v502 = vpop.f32.mrb[0].mxu0
        %v503 = vadd.f32 %v406, %v502
        %v504 = vpop.f32.mrb[0].mxu0
        %505 = vdwg.mxu0
        %v506 = vmax.f32 %v476, 0.0
        %v507 = vmax.f32 %v479, 0.0
        %v508 = vmax.f32 %v484, 0.0
        %v509 = vmax.f32 %v487, 0.0
        %v510 = vmax.f32 %v492, 0.0
        %v511 = vmax.f32 %v495, 0.0
        %v512 = vmax.f32 %v500, 0.0
        %v513 = vmax.f32 %v503, 0.0
        %514 = vst [vmem:[%s237] sm:$0xff] %v506
        %515 = vst [vmem:[%s237 + $0x8] sm:$0xff] %v507
        %516 = vst [vmem:[%s237 + $0x10] sm:$0xff] %v508
        %517 = vst [vmem:[%s237 + $0x18] sm:$0xff] %v509
        %518 = vst [vmem:[%s237 + $0x20] sm:$0xff] %v510
        %519 = vst [vmem:[%s237 + $0x28] sm:$0xff] %v511
        %520 = vst [vmem:[%s237 + $0x30] sm:$0xff] %v512
        %521 = vst [vmem:[%s237 + $0x38] sm:$0xff] %v513
        %s522 = sand.u32 %s153, 1
        %s523 = scalar_lea.sflag [#allocation3], %s522
        %s524 = sand.u32 %s153, 1
        %s525 = smul.addr %s524, 64
        %s526 = scalar_lea.vmem [#allocation2], %s525
        // Predicated region
        $region41: #{mlpnet_relu_forward.1} parent=39 // pred_check
          %p527 = pneg %p163
        $region42: #{mlpnet_relu_forward.1} parent=39 // pred_check_branch
          %529 = sbr.rel (%p527) target = $region44
        $region43: #{mlpnet_relu_forward.1} parent=39 // pred_region
          %s531 = ssub.s32 1024, 1024
          %532 = vsyncadd %s523, %s531
          %s533 = smul.addr %s23, 8
          %s534 = sadd.s32 %s24, %s533
          %s535 = smul.addr %s534, 128
          %s536 = scalar_lea.hbm %s5, %s535
          %s537 = sshll.u32 %s526, 4
          %s538 = int_to_ptr.vmem [resolvable:$true] %s537
          %543 = dma.vmem_to_hbm [thread:$0]  %s538, 1024, %s536, %s523, 128, 128, 8
        $region44: #{mlpnet_relu_forward.1} parent=39 // pred_fallthru
          _
      $region40: #{mlpnet_relu_forward.1} parent=5 // pred_fallthru
        _
      %p544 = scmp.le.s32.totalorder 2, %s14
      // Predicated region
      $region45: #{mlpnet_relu_forward.1} parent=5 // pred_check
        %p545 = pneg %p544
      $region46: #{mlpnet_relu_forward.1} parent=5 // pred_check_branch
        %547 = sbr.rel (%p545) target = $region48
      $region47: #{mlpnet_relu_forward.1} parent=5 // pred_region
        %s548 = ssub.s32 %s14, 2
        // Predicated region
        $region49: #{mlpnet_relu_forward.1} parent=47 // pred_check
          %p549 = pneg %p169
        $region50: #{mlpnet_relu_forward.1} parent=47 // pred_check_branch
          %551 = sbr.rel (%p549) target = $region52
        $region51: #{mlpnet_relu_forward.1} parent=47 // pred_region
          %s552 = sand.u32 %s154, 1
          %s553 = scalar_lea.sflag [#allocation3], %s552
          %s554 = sand.u32 %s154, 1
          %s555 = smul.addr %s554, 64
          %s556 = scalar_lea.vmem [#allocation2], %s555
          %557 = dma.done %s553, 1024
        $region52: #{mlpnet_relu_forward.1} parent=47 // pred_fallthru
          _
      $region48: #{mlpnet_relu_forward.1} parent=5 // pred_fallthru
        _
    $region6: #{mlpnet_relu_forward.1} parent=1 // loop_footer
      %s18 = sadd.s32 1, %s14
    $region7: #{mlpnet_relu_forward.1} parent=1 // loop_footer_branch
      %13 = sbr.rel target = $region3
    $region8: #{mlpnet_relu_forward.1} parent=1 // loop_exit
      _
    %558 = vsyncpa [#allocation3], 1
    %s559 = scalar_lea.sflag [#allocation3], 1
    %560 = vsyncpa %s559, 1

</llo_original>
